<compile_context>
chip_gen: v7x
topology: tpu7x:2x2x1
jax: 0.10.0
libtpu: 0.0.40
codegen_flags: <defaults>
</compile_context>

<pallas_src>
import jax
import jax.numpy as jnp
from jax.experimental import pallas as pl
from jax.experimental.pallas import tpu as pltpu


def _round_up(v: int, m: int) -> int:
    return (v + m - 1) // m * m


def single_layer_kernel(x_ref, w1_ref, b1_ref, w2_ref, b2_ref, o_ref):
    # fc1 on the MXU: [TB, Dp] @ [Dp, Hp], always accumulated in f32.
    h = jnp.dot(x_ref[...], w1_ref[...], preferred_element_type=jnp.float32)
    # Bias + ReLU epilogue in f32 on the VPU (never on bf16 values; v5e has
    # no bf16 VPU path).
    h = jnp.maximum(h + b1_ref[...], 0.0)
    # fc2 (N=1): keep it OFF the MXU. Broadcast-multiply by the w2 row
    # (VALU slot) and reduce over lanes (XLU slot) -> both otherwise idle.
    y = jnp.sum(h * w2_ref[...], axis=-1, keepdims=True)          # [TB, 1]
    # b2 is a scalar living in SMEM.
    o_ref[...] = (y + b2_ref[0, 0]).astype(o_ref.dtype)
    # NOTE: the [TB, 1] write is one contiguous (lane-masked) store per tile;
    # a fully lane-dense output slab would need a sublane->lane relayout in
    # the kernel, not worth it at these sizes.


def single_layer_forward(x, w1, b1, w2, b2, *, block_b=512, use_bf16=False):
    """Forward pass of SingleLayer.

    x:  [B, d] float32
    w1: [d, H] float32   (fc1.weight.T)      b1: [H] or [1, H]
    w2: [H, 1] or [H]    (fc2.weight.T)      b2: scalar / [1] / [1, 1]
    returns [B, 1] float32
    """
    B, d = x.shape
    H = w1.shape[1]

    # Lane padding: feature dims -> multiples of 128.
    d_pad = _round_up(d, 128)
    h_pad = _round_up(H, 128)

    # Batch tiling: `block_b` rows per tile (multiple of 8); pad B to a whole
    # number of tiles. Padded rows/features are zeros; padded outputs are
    # sliced off below.
    assert block_b % 8 == 0
    tb = min(block_b, _round_up(B, 8))
    b_pad = _round_up(B, tb)
    grid = (b_pad // tb,)

    # Optional bf16 MXU inputs (halves HBM bytes for x/w1, doubles MXU
    # throughput on v5e/v6e/v7x); accumulation stays f32 inside the kernel.
    mm_dtype = jnp.bfloat16 if use_bf16 else x.dtype

    x_p = jnp.zeros((b_pad, d_pad), mm_dtype).at[:B, :d].set(x.astype(mm_dtype))
    w1_p = jnp.zeros((d_pad, h_pad), mm_dtype).at[:d, :H].set(w1.astype(mm_dtype))
    b1_p = jnp.zeros((1, h_pad), jnp.float32).at[:, :H].set(
        jnp.asarray(b1, jnp.float32).reshape(1, H))
    # w2 as a [1, Hp] row so the kernel can broadcast it over batch rows.
    w2_row = jnp.zeros((1, h_pad), jnp.float32).at[:, :H].set(
        jnp.asarray(w2, jnp.float32).reshape(1, H))
    b2_s = jnp.asarray(b2, jnp.float32).reshape(1, 1)

    out = pl.pallas_call(
        single_layer_kernel,
        out_shape=jax.ShapeDtypeStruct((b_pad, 1), jnp.float32),
        grid=grid,
        in_specs=[
            pl.BlockSpec((tb, d_pad), lambda i: (i, 0)),        # x tile (pipelined)
            pl.BlockSpec((d_pad, h_pad), lambda i: (0, 0)),     # w1 (resident)
            pl.BlockSpec((1, h_pad), lambda i: (0, 0)),         # b1 (resident)
            pl.BlockSpec((1, h_pad), lambda i: (0, 0)),         # w2 row (resident)
            pl.BlockSpec(memory_space=pltpu.MemorySpace.SMEM),  # b2 scalar
        ],
        out_specs=pl.BlockSpec((tb, 1), lambda i: (i, 0)),
        compiler_params=pltpu.CompilerParams(
            # Batch tiles are independent -> parallel (lets v7x use both TCs).
            dimension_semantics=("parallel",),
            # Explicit VMEM budget with headroom (v7x has only 64 MiB total).
            vmem_limit_bytes=32 * 1024 * 1024,
        ),
    )(x_p, w1_p, b1_p, w2_row, b2_s)

    return out[:B, :]


def reference_forward(x, w1, b1, w2, b2):
    h = jnp.maximum(x @ w1 + jnp.reshape(b1, (1, -1)), 0.0)
    return h @ jnp.reshape(w2, (-1, 1)) + jnp.reshape(b2, (1, 1))


if __name__ == "__main__":
    # Shapes consistent with the module: d=32 input features, hidden=64.
    B, D, HIDDEN = 8, 32, 64

    key = jax.random.PRNGKey(0)
    kx, k1, kb1, k2, kb2, kx2 = jax.random.split(key, 6)

    x = jax.random.normal(kx, (B, D), dtype=jnp.float32)

    bound1 = 1.0 / jnp.sqrt(D)
    w1 = jax.random.uniform(k1, (D, HIDDEN), jnp.float32, -bound1, bound1)
    b1 = jax.random.uniform(kb1, (1, HIDDEN), jnp.float32, -bound1, bound1)
    bound2 = 1.0 / jnp.sqrt(HIDDEN)
    w2 = jax.random.uniform(k2, (HIDDEN, 1), jnp.float32, -bound2, bound2)
    b2 = jax.random.uniform(kb2, (1, 1), jnp.float32, -bound2, bound2)

    # 1) tiny batch (single tile), full f32 path
    out = single_layer_forward(x, w1, b1, w2, b2)
    jax.block_until_ready(out)
    ref = reference_forward(x, w1, b1, w2, b2)
    assert out.shape == (B, 1)
    assert jnp.allclose(out, ref, atol=1e-5, rtol=1e-5)

    # 2) larger, non-tile-multiple batch -> multiple parallel grid tiles + padding
    B2 = 600
    x2 = jax.random.normal(kx2, (B2, D), dtype=jnp.float32)
    out2 = single_layer_forward(x2, w1, b1, w2, b2, block_b=256)
    jax.block_until_ready(out2)
    ref2 = reference_forward(x2, w1, b1, w2, b2)
    assert out2.shape == (B2, 1)
    assert jnp.allclose(out2, ref2, atol=1e-5, rtol=1e-5)

    # 3) bf16 MXU inputs with f32 accumulation (v5e/v6e/v7x MXU-native path)
    out_bf16 = single_layer_forward(x2, w1, b1, w2, b2, block_b=256, use_bf16=True)
    jax.block_until_ready(out_bf16)
    assert jnp.allclose(out_bf16, ref2, atol=5e-2, rtol=5e-2)

    print("KERNEL_OK")
</pallas_src>

<mosaic_0001>
module attributes {stable_mosaic.version = 11 : i64} {
  func.func @single_layer_kernel(%arg0: i32, %arg1: memref<8x128xf32, #tpu.memory_space<vmem>>, %arg2: memref<128x128xf32, #tpu.memory_space<vmem>>, %arg3: memref<1x128xf32, #tpu.memory_space<vmem>>, %arg4: memref<1x128xf32, #tpu.memory_space<vmem>>, %arg5: memref<1x1xf32, #tpu.memory_space<smem>>, %arg6: memref<8x1xf32, #tpu.memory_space<vmem>>) attributes {dimension_semantics = [#tpu.dimension_semantics<parallel>], iteration_bounds = array<i64: 1>, scalar_prefetch = 0 : i64, scratch_operands = 0 : i64, tpu.core_type = #tpu.core_type<tc>, window_params = [{transform_indices = @transform_0, window_bounds = array<i64: 8, 128>}, {pipeline_mode = #tpu.pipeline_mode<synchronous>, transform_indices = @transform_1, window_bounds = array<i64: 128, 128>}, {pipeline_mode = #tpu.pipeline_mode<synchronous>, transform_indices = @transform_2, window_bounds = array<i64: 1, 128>}, {pipeline_mode = #tpu.pipeline_mode<synchronous>, transform_indices = @transform_3, window_bounds = array<i64: 1, 128>}, {transform_indices = @transform_4, window_bounds = array<i64: 1, 1>}, {transform_indices = @transform_5, window_bounds = array<i64: 8, 1>}]} {
    %c0 = arith.constant 0 : index
    %c0_0 = arith.constant 0 : index
    %0 = vector.load %arg1[%c0, %c0_0] : memref<8x128xf32, #tpu.memory_space<vmem>>, vector<8x128xf32>
    %c0_1 = arith.constant 0 : index
    %c0_2 = arith.constant 0 : index
    %1 = vector.load %arg2[%c0_1, %c0_2] : memref<128x128xf32, #tpu.memory_space<vmem>>, vector<128x128xf32>
    %cst = arith.constant dense<0.000000e+00> : vector<8x128xf32>
    %2 = tpu.matmul %0, %1, %cst {dimension_numbers = #tpu.dot_dimension_numbers<[1], [0], [0], [1], [0, 0, 1, 1], [], []>} : vector<8x128xf32>, vector<128x128xf32>, vector<8x128xf32> -> vector<8x128xf32>
    %c0_3 = arith.constant 0 : index
    %c0_4 = arith.constant 0 : index
    %3 = vector.load %arg3[%c0_3, %c0_4] : memref<1x128xf32, #tpu.memory_space<vmem>>, vector<1x128xf32>
    %4 = vector.broadcast %3 : vector<1x128xf32> to vector<8x128xf32>
    %5 = arith.addf %2, %4 : vector<8x128xf32>
    %cst_5 = arith.constant 0.000000e+00 : f32
    %6 = vector.broadcast %cst_5 : f32 to vector<8x128xf32>
    %7 = arith.maximumf %5, %6 : vector<8x128xf32>
    %c0_6 = arith.constant 0 : index
    %c0_7 = arith.constant 0 : index
    %8 = vector.load %arg4[%c0_6, %c0_7] : memref<1x128xf32, #tpu.memory_space<vmem>>, vector<1x128xf32>
    %9 = vector.broadcast %8 : vector<1x128xf32> to vector<8x128xf32>
    %10 = arith.mulf %7, %9 : vector<8x128xf32>
    %cst_8 = arith.constant dense<0.000000e+00> : vector<8xf32>
    %11 = vector.multi_reduction <add>, %10, %cst_8 [1] : vector<8x128xf32> to vector<8xf32>
    %12 = vector.shape_cast %11 : vector<8xf32> to vector<8x1xf32>
    %c0_9 = arith.constant 0 : index
    %c0_10 = arith.constant 0 : index
    %13 = memref.load %arg5[%c0_9, %c0_10] : memref<1x1xf32, #tpu.memory_space<smem>>
    %14 = vector.broadcast %13 : f32 to vector<8x1xf32>
    %15 = arith.addf %12, %14 : vector<8x1xf32>
    %c0_11 = arith.constant 0 : index
    %c0_12 = arith.constant 0 : index
    %16 = vector.load %arg6[%c0_11, %c0_12] : memref<8x1xf32, #tpu.memory_space<vmem>>, vector<8x1xf32>
    tpu.vector_store %arg6[%c0_11, %c0_12], %15 {strides = array<i32>} : memref<8x1xf32, #tpu.memory_space<vmem>>, vector<8x1xf32>,
    return
  }
  func.func @transform_0(%arg0: i32) -> (i32, i32) {
    %c0_i32 = arith.constant 0 : i32
    %c0_i32_0 = arith.constant 0 : i32
    return %arg0, %c0_i32 : i32, i32
  }
  func.func @transform_1(%arg0: i32) -> (i32, i32) {
    %c0_i32 = arith.constant 0 : i32
    %c0_i32_0 = arith.constant 0 : i32
    %c0_i32_1 = arith.constant 0 : i32
    return %c0_i32, %c0_i32_0 : i32, i32
  }
  func.func @transform_2(%arg0: i32) -> (i32, i32) {
    %c0_i32 = arith.constant 0 : i32
    %c0_i32_0 = arith.constant 0 : i32
    %c0_i32_1 = arith.constant 0 : i32
    return %c0_i32, %c0_i32_0 : i32, i32
  }
  func.func @transform_3(%arg0: i32) -> (i32, i32) {
    %c0_i32 = arith.constant 0 : i32
    %c0_i32_0 = arith.constant 0 : i32
    %c0_i32_1 = arith.constant 0 : i32
    return %c0_i32, %c0_i32_0 : i32, i32
  }
  func.func @transform_4(%arg0: i32) -> (i32, i32) {
    %c0_i32 = arith.constant 0 : i32
    %c0_i32_0 = arith.constant 0 : i32
    %c0_i32_1 = arith.constant 0 : i32
    return %c0_i32, %c0_i32_0 : i32, i32
  }
  func.func @transform_5(%arg0: i32) -> (i32, i32) {
    %c0_i32 = arith.constant 0 : i32
    %c0_i32_0 = arith.constant 0 : i32
    return %arg0, %c0_i32 : i32, i32
  }
}

</mosaic_0001>

<llo_original>
// kernel: tpu_custom_call.1
$region0: #{tpu_custom_call.1}
  #allocation0 [shape = 'u32[]', space=smem, size = 0x4, offset = 0x4, fixed_abs, tag = 'smem constant byte address 0x4 - core index']
  #allocation1 [shape = 'u32[144,128]{1,0:T(1,128)}', space=vmem, size = 0x12000, scoped, tag = 'internal scratch']
  #allocation2 [shape = 'f32[1,1]{1,0:T(1,128)S(6)}', space=smem, size = 0x200, scoped, tag = 'scoped memory for tpu_custom_call.1']
  %s0 = inlined_call_operand.hbm [shape: f32[8,128], index: 0, kind: input, shape index: {}]
  %s1 = inlined_call_operand.hbm [shape: f32[128,128], index: 1, kind: input, shape index: {}]
  %s2 = inlined_call_operand.vmem [shape: f32[1,128], index: 2, kind: input, shape index: {}]
  %s3 = inlined_call_operand.vmem [shape: f32[1,128], index: 3, kind: input, shape index: {}]
  %s4 = inlined_call_operand.<no memory space> [shape: f32[1,1], index: 4, kind: input, shape index: {}]
  %s5 = inlined_call_operand.vmem [shape: f32[8,1], index: 5, kind: output, shape index: {}]
  %s6 = sld [smem:[#allocation0]]
  $region38: #{tpu_custom_call.1} parent=0
    _
  %s8 = ssub.s32 1, %s6
  %s9 = scalar_select 0, %s8, %s6
  %10 = sst [smem:[#allocation2]] %s4
  $region1: #{tpu_custom_call.1} parent=0
    #allocation3 [shape = 'u8[4096]{0}', space=vmem, size = 0x1000, scoped, tag = 'input window, operand 0, single buffered']
    #allocation4 [shape = 's32[1]{0}', space=sflag, size = 0x4, scoped, tag = 'scoped memory for tpu_custom_call.1']
    #allocation5 [shape = 'u8[65536]{0}', space=vmem, size = 0x10000, scoped, tag = 'input window, operand 1, single buffered']
    #allocation6 [shape = 's32[1]{0}', space=sflag, size = 0x4, scoped, tag = 'scoped memory for tpu_custom_call.1']
    %11 = vsyncpa [#allocation4], 0
    %12 = vsyncpa [#allocation6], 0
    // Predicated region
    $region2: #{tpu_custom_call.1} parent=1 // pred_check
      _
    $region3: #{tpu_custom_call.1} parent=1 // pred_check_branch
      %14 = sbr.rel (0) target = $region5
    $region4: #{tpu_custom_call.1} parent=1 // pred_region
      %s16 = ssub.s32 128, 128
      %17 = vsyncadd [#allocation4], %s16
      %s19 = sshll.u32 [#allocation3], 4
      %s20 = int_to_ptr.vmem [resolvable:$true] %s19
      %22 = dma.hbm_to_vmem [thread:$0]  %s0, 128, %s20, [#allocation4]
    $region5: #{tpu_custom_call.1} parent=1 // pred_fallthru
      _
    // Predicated region
    $region6: #{tpu_custom_call.1} parent=1 // pred_check
      _
    $region7: #{tpu_custom_call.1} parent=1 // pred_check_branch
      %24 = sbr.rel (0) target = $region9
    $region8: #{tpu_custom_call.1} parent=1 // pred_region
      %s26 = ssub.s32 2048, 2048
      %27 = vsyncadd [#allocation6], %s26
      %s28 = sshll.u32 [#allocation5], 4
      %s29 = int_to_ptr.vmem [resolvable:$true] %s28
      %34 = dma.hbm_to_vmem [thread:$0]  %s1, 2048, %s29, [#allocation6], 128, 128, 8
    $region9: #{tpu_custom_call.1} parent=1 // pred_fallthru
      _
    // Predicated region
    $region10: #{tpu_custom_call.1} parent=1 // pred_check
      _
    $region11: #{tpu_custom_call.1} parent=1 // pred_check_branch
      %36 = sbr.rel (0) target = $region13
    $region12: #{tpu_custom_call.1} parent=1 // pred_region
      _
    $region13: #{tpu_custom_call.1} parent=1 // pred_fallthru
      _
    // Predicated region
    $region14: #{tpu_custom_call.1} parent=1 // pred_check
      _
    $region15: #{tpu_custom_call.1} parent=1 // pred_check_branch
      %38 = sbr.rel (0) target = $region17
    $region16: #{tpu_custom_call.1} parent=1 // pred_region
      _
    $region17: #{tpu_custom_call.1} parent=1 // pred_fallthru
      _
    // Predicated region
    $region18: #{tpu_custom_call.1} parent=1 // pred_check
      _
    $region19: #{tpu_custom_call.1} parent=1 // pred_check_branch
      %40 = sbr.rel (0) target = $region21
    $region20: #{tpu_custom_call.1} parent=1 // pred_region
      _
    $region21: #{tpu_custom_call.1} parent=1 // pred_fallthru
      _
    // Predicated region
    $region22: #{tpu_custom_call.1} parent=1 // pred_check
      _
    $region23: #{tpu_custom_call.1} parent=1 // pred_check_branch
      %42 = sbr.rel (0) target = $region25
    $region24: #{tpu_custom_call.1} parent=1 // pred_region
      %43 = dma.done [#allocation4], 128
    $region25: #{tpu_custom_call.1} parent=1 // pred_fallthru
      _
    // Predicated region
    $region26: #{tpu_custom_call.1} parent=1 // pred_check
      _
    $region27: #{tpu_custom_call.1} parent=1 // pred_check_branch
      %45 = sbr.rel (0) target = $region29
    $region28: #{tpu_custom_call.1} parent=1 // pred_region
      %46 = dma.done [#allocation6], 2048
    $region29: #{tpu_custom_call.1} parent=1 // pred_fallthru
      _
    %v47 = vld [vmem:[#allocation3] sm:$0xff]
    %v48 = vld [vmem:[#allocation5] sm:$0xff]
    %v49 = vld [vmem:[#allocation5 + $0x8] sm:$0xff]
    %v50 = vld [vmem:[#allocation5 + $0x10] sm:$0xff]
    %v51 = vld [vmem:[#allocation5 + $0x18] sm:$0xff]
    %v52 = vld [vmem:[#allocation5 + $0x20] sm:$0xff]
    %v53 = vld [vmem:[#allocation5 + $0x28] sm:$0xff]
    %v54 = vld [vmem:[#allocation5 + $0x30] sm:$0xff]
    %v55 = vld [vmem:[#allocation5 + $0x38] sm:$0xff]
    %v56 = vld [vmem:[#allocation5 + $0x40] sm:$0xff]
    %v57 = vld [vmem:[#allocation5 + $0x48] sm:$0xff]
    %v58 = vld [vmem:[#allocation5 + $0x50] sm:$0xff]
    %v59 = vld [vmem:[#allocation5 + $0x58] sm:$0xff]
    %v60 = vld [vmem:[#allocation5 + $0x60] sm:$0xff]
    %v61 = vld [vmem:[#allocation5 + $0x68] sm:$0xff]
    %v62 = vld [vmem:[#allocation5 + $0x70] sm:$0xff]
    %v63 = vld [vmem:[#allocation5 + $0x78] sm:$0xff]
    %v64 = vld [vmem:[%s2] sm:$0x1]
    %v66 = vlaneseq
    %v67 = vshrl.u32 %v66, 7
    %v68 = vsub.s32 0, %v67
    %v69 = vrot.slane %v64, %v68
    %71 = vmatprep.subr.mxu0 0.0
    %72 = vmatpush1.msra.mxu0 %v48
    %73 = vmatprep.subr.mxu0 0.0
    %74 = vmatpush1.msra.mxu0 %v49
    %75 = vmatprep.subr.mxu0 0.0
    %76 = vmatpush1.msra.mxu0 %v50
    %77 = vmatprep.subr.mxu0 0.0
    %78 = vmatpush1.msra.mxu0 %v51
    %79 = vmatprep.subr.mxu0 0.0
    %80 = vmatpush1.msra.mxu0 %v52
    %81 = vmatprep.subr.mxu0 0.0
    %82 = vmatpush1.msra.mxu0 %v53
    %83 = vmatprep.subr.mxu0 0.0
    %84 = vmatpush1.msra.mxu0 %v54
    %85 = vmatprep.subr.mxu0 0.0
    %86 = vmatpush1.msra.mxu0 %v55
    %87 = vmatprep.subr.mxu0 0.0
    %88 = vmatpush1.msra.mxu0 %v56
    %89 = vmatprep.subr.mxu0 0.0
    %90 = vmatpush1.msra.mxu0 %v57
    %91 = vmatprep.subr.mxu0 0.0
    %92 = vmatpush1.msra.mxu0 %v58
    %93 = vmatprep.subr.mxu0 0.0
    %94 = vmatpush1.msra.mxu0 %v59
    %95 = vmatprep.subr.mxu0 0.0
    %96 = vmatpush1.msra.mxu0 %v60
    %97 = vmatprep.subr.mxu0 0.0
    %98 = vmatpush1.msra.mxu0 %v61
    %99 = vmatprep.subr.mxu0 0.0
    %100 = vmatpush1.msra.mxu0 %v62
    %101 = vmatprep.subr.mxu0 0.0
    %102 = vmatpush1.msra.mxu0 %v63
    %103 = vmatprep.subr.mxu0 0.0
    %104 = vmatpush1.msra.mxu0 0.0
    %105 = vmatprep.subr.mxu0 0.0
    %106 = vmatpush1.msra.mxu0 0.0
    %107 = vmatprep.subr.mxu0 0.0
    %108 = vmatpush1.msra.mxu0 0.0
    %109 = vmatprep.subr.mxu0 0.0
    %110 = vmatpush1.msra.mxu0 0.0
    %111 = vmatprep.subr.mxu0 0.0
    %112 = vmatpush1.msra.mxu0 0.0
    %113 = vmatprep.subr.mxu0 0.0
    %114 = vmatpush1.msra.mxu0 0.0
    %115 = vmatprep.subr.mxu0 0.0
    %116 = vmatpush1.msra.mxu0 0.0
    %117 = vmatprep.subr.mxu0 0.0
    %118 = vmatpush1.msra.mxu0 0.0
    %119 = vmatprep.subr.mxu0 0.0
    %120 = vmatpush1.msra.mxu0 0.0
    %121 = vmatprep.subr.mxu0 0.0
    %122 = vmatpush1.msra.mxu0 0.0
    %123 = vmatprep.subr.mxu0 0.0
    %124 = vmatpush1.msra.mxu0 0.0
    %125 = vmatprep.subr.mxu0 0.0
    %126 = vmatpush1.msra.mxu0 0.0
    %127 = vmatprep.subr.mxu0 0.0
    %128 = vmatpush1.msra.mxu0 0.0
    %129 = vmatprep.subr.mxu0 0.0
    %130 = vmatpush1.msra.mxu0 0.0
    %131 = vmatprep.subr.mxu0 0.0
    %132 = vmatpush1.msra.mxu0 0.0
    %133 = vmatprep.subr.mxu0 0.0
    %134 = vmatpush1.msra.mxu0 0.0
    %135 = vmatprep.mubr.f32.mxu0 0.0
    %136 = vmatmul.mubr.f32.gmra.mrb[0].mxu0 %v47
    %v137 = vpop.f32.mrb[0].mxu0
    %v138 = vadd.f32 %v69, %v137
    %v139 = vpop.f32.mrb[0].mxu0
    %140 = vdwg.mxu0
    %v141 = vmax.f32 %v138, 0.0
    %v142 = vld [vmem:[%s3] sm:$0x1]
    %v144 = vlaneseq
    %v145 = vshrl.u32 %v144, 7
    %v146 = vsub.s32 0, %v145
    %v147 = vrot.slane %v142, %v146
    %v149 = vmul.f32 %v141, %v147
    %150 = vadd.xlane.f32.xlu0 %v149
    %v151 = vpop.xlane.xlu0 %150
    %s152 = sld [smem:[#allocation2]]
    %v153 = vstv %s152
    %v154 = vadd.f32 %v151, %v153
    %vm155 = vcmask 7168
    %156 = vst.msk [vmem:[%s5] sm:$0xff] %vm155, %v154
    // Predicated region
    $region30: #{tpu_custom_call.1} parent=1 // pred_check
      _
    $region31: #{tpu_custom_call.1} parent=1 // pred_check_branch
      %158 = sbr.rel (0) target = $region33
    $region32: #{tpu_custom_call.1} parent=1 // pred_region
      _
    $region33: #{tpu_custom_call.1} parent=1 // pred_fallthru
      _
    // Predicated region
    $region34: #{tpu_custom_call.1} parent=1 // pred_check
      _
    $region35: #{tpu_custom_call.1} parent=1 // pred_check_branch
      %160 = sbr.rel (0) target = $region37
    $region36: #{tpu_custom_call.1} parent=1 // pred_region
      _
    $region37: #{tpu_custom_call.1} parent=1 // pred_fallthru
      _
    %161 = vsyncpa [#allocation4], 1
    %162 = vsyncpa [#allocation6], 1

</llo_original>
